<compile_context>
chip_gen: v7x
topology: tpu7x:2x2x1
jax: 0.10.0
libtpu: 0.0.40
codegen_flags: <defaults>
</compile_context>

<pallas_src>
from functools import partial

import jax
import jax.numpy as jnp
from jax.experimental import pallas as pl
from jax.experimental.pallas import tpu as pltpu

_HALO = 128  # lane-aligned width of the causal left-context block


def _causal_conv1d_kernel(*refs, num_taps, dilation, pad, has_halo):
    """One (batch, time-tile, C_out-tile) grid step.

    refs (has_halo=True):  x_ref, h_ref, w_ref, b_ref, o_ref
    refs (has_halo=False): x_ref,        w_ref, b_ref, o_ref

      x_ref : (1, C_rows, L)              current input time tile
      h_ref : (1, C_rows, _HALO)          the 128 input columns preceding it
      w_ref : (co_tile, num_taps*C_rows)  weight, taps folded along columns
      b_ref : (co_tile, 1)                bias (f32)
      o_ref : (1, co_tile, L)             output tile
    """
    if has_halo:
        x_ref, h_ref, w_ref, b_ref, o_ref = refs
    else:
        x_ref, w_ref, b_ref, o_ref = refs

    x = x_ref[0]                          # (C_rows, L)
    c_rows, L = x.shape

    if pad > 0:
        if has_halo:
            hv = h_ref[0]
            # First time tile: the causal left pad is zeros (the delivered halo
            # block is a clamped duplicate of block 0 and must be ignored).
            h = jnp.where(pl.program_id(1) == 0, jnp.zeros_like(hv), hv)
        else:
            h = jnp.zeros((c_rows, _HALO), x.dtype)
        # Lane-aligned concat (128 | multiple-of-128): just vreg placement.
        win = jnp.concatenate([h, x], axis=-1)      # (C_rows, _HALO + L)
        base = _HALO - pad
    else:
        win = x
        base = 0

    # K accumulating MXU matmuls on (lane-shifted) slices of the window value.
    # No tap-stack / window scratch is materialized; the last tap's slice is
    # lane-aligned (it is exactly the current tile).
    acc = None
    for k in range(num_taps):                       # static unroll, K is small
        if pad > 0:
            off = base + k * dilation               # static lane offset
            op = win[:, off:off + L]
        else:
            op = x
        wk = w_ref[:, k * c_rows:(k + 1) * c_rows]
        contrib = jnp.dot(wk, op, preferred_element_type=jnp.float32)
        acc = contrib if acc is None else acc + contrib

    o_ref[0] = (acc + b_ref[...]).astype(o_ref.dtype)


def prepare_causal_conv1d_weights(weight_v, weight_g, bias, compute_dtype=None):
    """weight_norm (dim=0) + layout prep.  Hoist this out of the hot path when
    the layer is applied repeatedly (HiFi-GAN stack / streaming inference).

    Returns (w_flat, b_col): (C_out, K*C_in) weight with the K taps folded into
    the contraction dim (tap k = columns k*C_in:(k+1)*C_in), and (C_out, 1)
    f32 bias.
    """
    C_out, C_in, K = weight_v.shape
    # w = g * v / ||v||, norm over (C_in, K) per out channel.  No epsilon,
    # matching PyTorch: an exactly-zero filter would give NaN.
    norm = jnp.sqrt(jnp.sum(weight_v * weight_v, axis=(1, 2), keepdims=True))
    weight = weight_g * weight_v / norm                         # (C_out, C_in, K)
    w_flat = jnp.transpose(weight, (0, 2, 1)).reshape(C_out, K * C_in)
    if compute_dtype is not None:
        w_flat = w_flat.astype(compute_dtype)
    if bias is None:
        b_col = jnp.zeros((C_out, 1), jnp.float32)
    else:
        b_col = bias.reshape(C_out, 1).astype(jnp.float32)
    return w_flat, b_col


def causal_conv1d_apply(x, w_flat, b_col, *, kernel_size, stride=1, dilation=1,
                        max_t_tile=1024, max_co_tile=512, compute_dtype=None,
                        vmem_limit_bytes=None):
    """Apply CausalConv1d given pre-prepared weights.  x: (B, C_in, T)."""
    B, C_in, T = x.shape
    K = kernel_size
    C_out = w_flat.shape[0]
    assert w_flat.shape[1] == K * C_in, "groups != 1 not supported"
    assert max_t_tile % 128 == 0 and max_t_tile >= 128

    pad = (K - 1) * dilation
    t_out = (T - 1) // stride + 1                    # == T for stride 1

    fast = (stride == 1) and (pad <= _HALO)
    if fast:
        x_in, c_rows, num_taps, d_eff, eff_pad = x, C_in, K, dilation, pad
    else:
        # Rare fallback (stride > 1 or receptive field > 128 columns):
        # wrapper-side im2col; the kernel then does a single plain matmul.
        x_pad = jnp.pad(x, ((0, 0), (0, 0), (pad, 0)))
        cols = [jax.lax.slice(
                    x_pad, (0, 0, k * dilation),
                    (B, C_in, k * dilation + (t_out - 1) * stride + 1),
                    (1, 1, stride)) for k in range(K)]
        x_in = jnp.concatenate(cols, axis=1)          # (B, K*C_in, t_out)
        c_rows, num_taps, d_eff, eff_pad = K * C_in, 1, 1, 0

    if compute_dtype is not None:
        x_in = x_in.astype(compute_dtype)
        w_flat = w_flat.astype(compute_dtype)

    t_tile = t_out if t_out <= max_t_tile else max_t_tile
    co_tile = C_out if C_out <= max_co_tile else max_co_tile
    n_t = -(-t_out // t_tile)
    n_co = -(-C_out // co_tile)
    # n_t == 1: the whole causal left context is zeros -> no halo input needed.
    has_halo = fast and eff_pad > 0 and n_t > 1

    in_specs = [pl.BlockSpec((1, c_rows, t_tile), lambda b, t, co: (b, 0, t))]
    operands = [x_in]
    if has_halo:
        hb = t_tile // _HALO                          # t_tile is a mult of 128
        in_specs.append(pl.BlockSpec(
            (1, c_rows, _HALO),
            lambda b, t, co: (b, 0, jnp.maximum(t * hb - 1, 0))))
        operands.append(x_in)        # same array, second (128-column) view
    in_specs += [
        pl.BlockSpec((co_tile, num_taps * c_rows), lambda b, t, co: (co, 0)),
        pl.BlockSpec((co_tile, 1), lambda b, t, co: (co, 0)),
    ]
    operands += [w_flat, b_col]

    kernel = partial(_causal_conv1d_kernel, num_taps=num_taps, dilation=d_eff,
                     pad=eff_pad, has_halo=has_halo)

    return pl.pallas_call(
        kernel,
        out_shape=jax.ShapeDtypeStruct((B, C_out, t_out), x.dtype),
        grid_spec=pltpu.PrefetchScalarGridSpec(
            num_scalar_prefetch=0,
            grid=(B, n_t, n_co),                      # co innermost: x tile
            in_specs=in_specs,                        # never re-DMAed over co
            out_specs=pl.BlockSpec((1, co_tile, t_tile),
                                   lambda b, t, co: (b, co, t)),
        ),
        compiler_params=pltpu.CompilerParams(
            dimension_semantics=("parallel", "parallel", "parallel"),
            vmem_limit_bytes=vmem_limit_bytes),
    )(*operands)


def causal_conv1d(x, weight_v, weight_g, bias, *, stride=1, dilation=1,
                  max_t_tile=1024, max_co_tile=512, compute_dtype=None,
                  vmem_limit_bytes=None):
    """CausalConv1d.forward.  x: (B, C_in, T) in NCT layout.

    compute_dtype=jnp.bfloat16 halves HBM/VMEM traffic (recommended on
    v6e/v7x); accumulation and bias stay f32.  For repeated application call
    prepare_causal_conv1d_weights() once and causal_conv1d_apply() per step.
    """
    C_out, C_in_w, K = weight_v.shape
    assert C_in_w == x.shape[1], "groups != 1 not supported"
    w_flat, b_col = prepare_causal_conv1d_weights(weight_v, weight_g, bias,
                                                  compute_dtype=compute_dtype)
    return causal_conv1d_apply(x, w_flat, b_col, kernel_size=K, stride=stride,
                               dilation=dilation, max_t_tile=max_t_tile,
                               max_co_tile=max_co_tile,
                               compute_dtype=compute_dtype,
                               vmem_limit_bytes=vmem_limit_bytes)


def _reference(x, weight_v, weight_g, bias, *, stride=1, dilation=1):
    """Pure-JAX reference for correctness checking."""
    C_out, C_in, K = weight_v.shape
    norm = jnp.sqrt(jnp.sum(weight_v * weight_v, axis=(1, 2), keepdims=True))
    weight = weight_g * weight_v / norm
    pad = (K - 1) * dilation
    x_pad = jnp.pad(x, ((0, 0), (0, 0), (pad, 0)))
    out = jax.lax.conv_general_dilated(
        x_pad, weight,
        window_strides=(stride,), padding=[(0, 0)],
        rhs_dilation=(dilation,),
        dimension_numbers=("NCH", "OIH", "NCH"),
    )
    return out + bias[None, :, None]


if __name__ == "__main__":
    def _check(B, C_in, C_out, K, T, stride, dilation,
               atol=1e-5, rtol=1e-5, **kw):
        key = jax.random.PRNGKey(0)
        kx, kv, kb = jax.random.split(key, 3)
        x = jax.random.normal(kx, (B, C_in, T), dtype=jnp.float32)
        # init_weights in HiFi-GAN: normal(mean=0, std=0.01) on the conv weight
        weight_v = 0.01 * jax.random.normal(kv, (C_out, C_in, K), dtype=jnp.float32)
        # weight_norm init: g = ||v|| per output channel
        weight_g = jnp.sqrt(jnp.sum(weight_v * weight_v, axis=(1, 2), keepdims=True))
        bias = 0.01 * jax.random.normal(kb, (C_out,), dtype=jnp.float32)

        out = causal_conv1d(x, weight_v, weight_g, bias,
                            stride=stride, dilation=dilation, **kw)
        out = jax.block_until_ready(out)
        ref = _reference(x, weight_v, weight_g, bias,
                         stride=stride, dilation=dilation)
        assert out.shape == ref.shape, (out.shape, ref.shape)
        err = float(jnp.max(jnp.abs(out - ref)))
        assert jnp.allclose(out, ref, atol=atol, rtol=rtol), err

    # 1) small shapes, single time tile (causal pad = in-kernel zero halo)
    _check(2, 8, 8, 3, 16, 1, 2)
    # 2) time tiling + halo delivered from the previous tile's columns via the
    #    second block view + C_out tiling + partial final time tile
    _check(1, 16, 16, 3, 700, 1, 3, max_t_tile=256, max_co_tile=8)
    # 3) unaligned channel count -> now also the fast path (no im2col)
    _check(2, 4, 6, 3, 16, 1, 2)
    # 4) stride > 1 -> wrapper im2col fallback, plain matmul kernel
    _check(2, 4, 6, 3, 16, 2, 2)
    # 5) bf16 operands with f32 accumulation, multi-tile halo path (loose tol)
    _check(1, 16, 16, 3, 300, 1, 2, atol=2e-3, rtol=2e-2,
           max_t_tile=128, compute_dtype=jnp.bfloat16)

    print("KERNEL_OK")
</pallas_src>

<mosaic_0001>
module attributes {stable_mosaic.version = 11 : i64} {
  func.func @_causal_conv1d_kernel(%arg0: i32, %arg1: i32, %arg2: i32, %arg3: memref<1x8x16xf32, #tpu.memory_space<vmem>>, %arg4: memref<8x24xf32, #tpu.memory_space<vmem>>, %arg5: memref<8x1xf32, #tpu.memory_space<vmem>>, %arg6: memref<1x8x16xf32, #tpu.memory_space<vmem>>) attributes {dimension_semantics = [#tpu.dimension_semantics<parallel>, #tpu.dimension_semantics<parallel>, #tpu.dimension_semantics<parallel>], iteration_bounds = array<i64: 2, 1, 1>, scalar_prefetch = 0 : i64, scratch_operands = 0 : i64, tpu.core_type = #tpu.core_type<tc>, window_params = [{transform_indices = @transform_0, window_bounds = array<i64: 1, 8, 16>}, {transform_indices = @transform_1, window_bounds = array<i64: 8, 24>}, {transform_indices = @transform_2, window_bounds = array<i64: 8, 1>}, {transform_indices = @transform_3, window_bounds = array<i64: 1, 8, 16>}]} {
    %c0 = arith.constant 0 : index
    %c0_0 = arith.constant 0 : index
    %c0_1 = arith.constant 0 : index
    %0 = vector.load %arg3[%c0, %c0_0, %c0_1] : memref<1x8x16xf32, #tpu.memory_space<vmem>>, vector<1x8x16xf32>
    %1 = vector.shape_cast %0 : vector<1x8x16xf32> to vector<8x16xf32>
    %cst = arith.constant 0.000000e+00 : f32
    %2 = vector.broadcast %cst : f32 to vector<8x128xf32>
    %3 = tpu.concatenate %2, %1 in 1 : vector<8x128xf32>, vector<8x16xf32> -> vector<8x144xf32>
    %4 = vector.extract_strided_slice %3 {offsets = [0, 124], sizes = [8, 16], strides = [1, 1]} : vector<8x144xf32> to vector<8x16xf32>
    %c0_2 = arith.constant 0 : index
    %c0_3 = arith.constant 0 : index
    %5 = vector.load %arg4[%c0_2, %c0_3] : memref<8x24xf32, #tpu.memory_space<vmem>>, vector<8x8xf32>
    %cst_4 = arith.constant dense<0.000000e+00> : vector<8x16xf32>
    %6 = tpu.matmul %5, %4, %cst_4 {dimension_numbers = #tpu.dot_dimension_numbers<[1], [0], [0], [1], [0, 0, 1, 1], [], []>} : vector<8x8xf32>, vector<8x16xf32>, vector<8x16xf32> -> vector<8x16xf32>
    %7 = vector.extract_strided_slice %3 {offsets = [0, 126], sizes = [8, 16], strides = [1, 1]} : vector<8x144xf32> to vector<8x16xf32>
    %c0_5 = arith.constant 0 : index
    %c8 = arith.constant 8 : index
    %8 = vector.load %arg4[%c0_5, %c8] : memref<8x24xf32, #tpu.memory_space<vmem>>, vector<8x8xf32>
    %cst_6 = arith.constant dense<0.000000e+00> : vector<8x16xf32>
    %9 = tpu.matmul %8, %7, %cst_6 {dimension_numbers = #tpu.dot_dimension_numbers<[1], [0], [0], [1], [0, 0, 1, 1], [], []>} : vector<8x8xf32>, vector<8x16xf32>, vector<8x16xf32> -> vector<8x16xf32>
    %10 = arith.addf %6, %9 : vector<8x16xf32>
    %11 = vector.extract_strided_slice %3 {offsets = [0, 128], sizes = [8, 16], strides = [1, 1]} : vector<8x144xf32> to vector<8x16xf32>
    %c0_7 = arith.constant 0 : index
    %c16 = arith.constant 16 : index
    %12 = vector.load %arg4[%c0_7, %c16] : memref<8x24xf32, #tpu.memory_space<vmem>>, vector<8x8xf32>
    %cst_8 = arith.constant dense<0.000000e+00> : vector<8x16xf32>
    %13 = tpu.matmul %12, %11, %cst_8 {dimension_numbers = #tpu.dot_dimension_numbers<[1], [0], [0], [1], [0, 0, 1, 1], [], []>} : vector<8x8xf32>, vector<8x16xf32>, vector<8x16xf32> -> vector<8x16xf32>
    %14 = arith.addf %10, %13 : vector<8x16xf32>
    %c0_9 = arith.constant 0 : index
    %c0_10 = arith.constant 0 : index
    %15 = vector.load %arg5[%c0_9, %c0_10] : memref<8x1xf32, #tpu.memory_space<vmem>>, vector<8x1xf32>
    %16 = vector.broadcast %15 : vector<8x1xf32> to vector<8x16xf32>
    %17 = arith.addf %14, %16 : vector<8x16xf32>
    %c0_11 = arith.constant 0 : index
    %c0_12 = arith.constant 0 : index
    %c0_13 = arith.constant 0 : index
    %18 = vector.load %arg6[%c0_11, %c0_12, %c0_13] : memref<1x8x16xf32, #tpu.memory_space<vmem>>, vector<1x8x16xf32>
    %19 = vector.shape_cast %18 : vector<1x8x16xf32> to vector<8x16xf32>
    %20 = vector.shape_cast %17 : vector<8x16xf32> to vector<1x8x16xf32>
    tpu.vector_store %arg6[%c0_11, %c0_12, %c0_13], %20 {strides = array<i32>} : memref<1x8x16xf32, #tpu.memory_space<vmem>>, vector<1x8x16xf32>,
    return
  }
  func.func @transform_0(%arg0: i32, %arg1: i32, %arg2: i32) -> (i32, i32, i32) {
    %c0_i32 = arith.constant 0 : i32
    %c0_i32_0 = arith.constant 0 : i32
    return %arg0, %c0_i32, %arg1 : i32, i32, i32
  }
  func.func @transform_1(%arg0: i32, %arg1: i32, %arg2: i32) -> (i32, i32) {
    %c0_i32 = arith.constant 0 : i32
    %c0_i32_0 = arith.constant 0 : i32
    return %arg2, %c0_i32 : i32, i32
  }
  func.func @transform_2(%arg0: i32, %arg1: i32, %arg2: i32) -> (i32, i32) {
    %c0_i32 = arith.constant 0 : i32
    %c0_i32_0 = arith.constant 0 : i32
    return %arg2, %c0_i32 : i32, i32
  }
  func.func @transform_3(%arg0: i32, %arg1: i32, %arg2: i32) -> (i32, i32, i32) {
    %c0_i32 = arith.constant 0 : i32
    return %arg0, %arg2, %arg1 : i32, i32, i32
  }
}

</mosaic_0001>

<llo_original>
// kernel: tpu_custom_call.1
$region0: #{tpu_custom_call.1}
  #allocation0 [shape = 'u32[]', space=smem, size = 0x4, offset = 0x4, fixed_abs, tag = 'smem constant byte address 0x4 - core index']
  #allocation1 [shape = 'u32[144,128]{1,0:T(1,128)}', space=vmem, size = 0x12000, scoped, tag = 'internal scratch']
  %s0 = inlined_call_operand.hbm [shape: f32[2,8,16], index: 0, kind: input, shape index: {}]
  %s1 = inlined_call_operand.vmem [shape: f32[8,24], index: 1, kind: input, shape index: {}]
  %s2 = inlined_call_operand.vmem [shape: f32[8,1], index: 2, kind: input, shape index: {}]
  %s3 = inlined_call_operand.hbm [shape: f32[2,8,16], index: 3, kind: output, shape index: {}]
  %s4 = sld [smem:[#allocation0]]
  $region49: #{tpu_custom_call.1} parent=0
    _
  %s6 = ssub.s32 1, %s4
  %s7 = scalar_select 0, %s6, %s4
  $region1: #{tpu_custom_call.1} parent=0
    #allocation2 [shape = 'u8[8192]{0}', space=vmem, size = 0x2000, scoped, tag = 'input window, operand 0']
    #allocation3 [shape = 's32[2]{0}', space=sflag, size = 0x8, scoped, tag = 'scoped memory for tpu_custom_call.1']
    #allocation4 [shape = 's32[2]{0}', space=sflag, size = 0x8, scoped, tag = 'scoped memory for tpu_custom_call.1']
    #allocation5 [shape = 'u8[8192]{0}', space=vmem, size = 0x2000, scoped, tag = 'output window, operand 0']
    %8 = vsyncpa [#allocation3], 0
    %s9 = scalar_lea.sflag [#allocation3], 1
    %10 = vsyncpa %s9, 0
    %11 = vsyncpa [#allocation4], 0
    %s12 = scalar_lea.sflag [#allocation4], 1
    %13 = vsyncpa %s12, 0
    loop: start=0, step=1, limit=4
    $region2: #{tpu_custom_call.1} parent=1 // loop_pre_header
      _
    $region3: #{tpu_custom_call.1} parent=1 // loop_header
      %s15 = sphi 0, %s19
      %p16 = scmp.ge.s32.totalorder %s15, 4
      %s22 = sphi 0, %s41
      %s23 = sphi 0, %s37
      %s24 = sphi 0, %s33
      %s25 = sphi 0, %s22
      %s26 = sphi 0, %s23
      %s27 = sphi 0, %s24
      %s28 = sphi 0, %s25
      %s29 = sphi 0, %s26
      %s30 = sphi 0, %s27
      %s46 = sphi 0, %s48
      %s49 = sphi 0, %s46
      %s50 = sphi 0, %s49
      %s66 = sphi 0, %s50
      %s72 = sphi 0, %s74
      %s75 = sphi 0, %s72
      %s76 = sphi 0, %s75
      %s92 = sphi 0, %s76
      %s98 = sphi 0, %s100
      %s101 = sphi 0, %s98
      %s102 = sphi 0, %s101
      %s118 = sphi 0, %s102
      %s128 = sphi 0, %s130
      %s131 = sphi 0, %s128
      %s132 = sphi 0, %s131
      %s148 = sphi 0, %s132
    $region4: #{tpu_custom_call.1} parent=1 // loop_header_branch
      %18 = sbr.rel (%p16) target = $region8
    $region5: #{tpu_custom_call.1} parent=1 // loop_body
      %s20 = ssub.s32 %s15, 1
      %s21 = ssub.s32 %s15, 2
      %s31 = sadd.s32 1, %s24
      %p32 = scmp.ge.s32.totalorder %s31, 1
      %s33 = scalar_select %p32, 0, %s31
      %s34 = sadd.s32 1, %s23
      %s35 = scalar_select %p32, %s34, %s23
      %p36 = scmp.ge.s32.totalorder %s35, 1
      %s37 = scalar_select %p36, 0, %s35
      %s38 = sadd.s32 1, %s22
      %s39 = scalar_select %p36, %s38, %s22
      %p40 = scmp.ge.s32.totalorder %s39, 2
      %s41 = scalar_select %p40, 0, %s39
      %s42 = ssub.s32 %s22, %s41
      %s43 = ssub.s32 %s23, %s37
      %s44 = sor.u32 %s42, %s43
      %p45 = scmp.eq.s32.totalorder %s44, 0
      %s47 = sadd.s32 %s46, 1
      %s48 = scalar_select %p45, %s46, %s47
      %p51 = pneg %p45
      %p52 = scmp.eq.s32.totalorder %s15, 1
      %p53 = por %p51, %p52
      %p54 = scmp.ne.s32.totalorder %s46, %s49
      %p55 = scmp.eq.s32.totalorder %s15, 0
      %p56 = por %p54, %p55
      %p57 = scmp.ne.s32.totalorder %s46, %s49
      %p58 = scmp.eq.s32.totalorder %s20, 1
      %p59 = por %p57, %p58
      %p60 = scmp.ne.s32.totalorder %s49, %s50
      %p61 = scmp.eq.s32.totalorder %s20, 0
      %p62 = por %p60, %p61
      %p63 = scmp.ne.s32.totalorder %s49, %s50
      %p64 = scmp.eq.s32.totalorder %s21, 1
      %p65 = por %p63, %p64
      %p67 = scmp.ne.s32.totalorder %s50, %s66
      %p68 = scmp.eq.s32.totalorder %s21, 0
      %p69 = por %p67, %p68
      %s70 = ssub.s32 %s24, %s33
      %p71 = scmp.eq.s32.totalorder %s70, 0
      %s73 = sadd.s32 %s72, 1
      %s74 = scalar_select %p71, %s72, %s73
      %p77 = pneg %p71
      %p78 = scmp.eq.s32.totalorder %s15, 1
      %p79 = por %p77, %p78
      %p80 = scmp.ne.s32.totalorder %s72, %s75
      %p81 = scmp.eq.s32.totalorder %s15, 0
      %p82 = por %p80, %p81
      %p83 = scmp.ne.s32.totalorder %s72, %s75
      %p84 = scmp.eq.s32.totalorder %s20, 1
      %p85 = por %p83, %p84
      %p86 = scmp.ne.s32.totalorder %s75, %s76
      %p87 = scmp.eq.s32.totalorder %s20, 0
      %p88 = por %p86, %p87
      %p89 = scmp.ne.s32.totalorder %s75, %s76
      %p90 = scmp.eq.s32.totalorder %s21, 1
      %p91 = por %p89, %p90
      %p93 = scmp.ne.s32.totalorder %s76, %s92
      %p94 = scmp.eq.s32.totalorder %s21, 0
      %p95 = por %p93, %p94
      %s96 = ssub.s32 %s24, %s33
      %p97 = scmp.eq.s32.totalorder %s96, 0
      %s99 = sadd.s32 %s98, 1
      %s100 = scalar_select %p97, %s98, %s99
      %p103 = pneg %p97
      %p104 = scmp.eq.s32.totalorder %s15, 1
      %p105 = por %p103, %p104
      %p106 = scmp.ne.s32.totalorder %s98, %s101
      %p107 = scmp.eq.s32.totalorder %s15, 0
      %p108 = por %p106, %p107
      %p109 = scmp.ne.s32.totalorder %s98, %s101
      %p110 = scmp.eq.s32.totalorder %s20, 1
      %p111 = por %p109, %p110
      %p112 = scmp.ne.s32.totalorder %s101, %s102
      %p113 = scmp.eq.s32.totalorder %s20, 0
      %p114 = por %p112, %p113
      %p115 = scmp.ne.s32.totalorder %s101, %s102
      %p116 = scmp.eq.s32.totalorder %s21, 1
      %p117 = por %p115, %p116
      %p119 = scmp.ne.s32.totalorder %s102, %s118
      %p120 = scmp.eq.s32.totalorder %s21, 0
      %p121 = por %p119, %p120
      %s122 = ssub.s32 %s22, %s41
      %s123 = ssub.s32 %s24, %s33
      %s124 = sor.u32 %s122, %s123
      %s125 = ssub.s32 %s23, %s37
      %s126 = sor.u32 %s124, %s125
      %p127 = scmp.eq.s32.totalorder %s126, 0
      %s129 = sadd.s32 %s128, 1
      %s130 = scalar_select %p127, %s128, %s129
      %p133 = pneg %p127
      %p134 = scmp.eq.s32.totalorder %s15, 1
      %p135 = por %p133, %p134
      %p136 = scmp.ne.s32.totalorder %s128, %s131
      %p137 = scmp.eq.s32.totalorder %s15, 0
      %p138 = por %p136, %p137
      %p139 = scmp.ne.s32.totalorder %s128, %s131
      %p140 = scmp.eq.s32.totalorder %s20, 1
      %p141 = por %p139, %p140
      %p142 = scmp.ne.s32.totalorder %s131, %s132
      %p143 = scmp.eq.s32.totalorder %s20, 0
      %p144 = por %p142, %p143
      %p145 = scmp.ne.s32.totalorder %s131, %s132
      %p146 = scmp.eq.s32.totalorder %s21, 1
      %p147 = por %p145, %p146
      %p149 = scmp.ne.s32.totalorder %s132, %s148
      %p150 = scmp.eq.s32.totalorder %s21, 0
      %p151 = por %p149, %p150
      %p152 = scmp.le.s32.totalorder 1, %s15
      %p153 = scmp.lt.s32.totalorder %s15, 3
      %p154 = pnand %p152, %p153
      %p155 = pneg %p154
      // Predicated region
      $region9: #{tpu_custom_call.1} parent=5 // pred_check
        _
      $region10: #{tpu_custom_call.1} parent=5 // pred_check_branch
        %157 = sbr.rel (%p154) target = $region12
      $region11: #{tpu_custom_call.1} parent=5 // pred_region
        %s158 = ssub.s32 %s15, 1
        // Predicated region
        $region13: #{tpu_custom_call.1} parent=11 // pred_check
          %p159 = pneg %p88
        $region14: #{tpu_custom_call.1} parent=11 // pred_check_branch
          %161 = sbr.rel (%p159) target = $region16
        $region15: #{tpu_custom_call.1} parent=11 // pred_region
          %p162 = scmp.lt.s32.totalorder %s27, 0
          %s163 = scalar_select %p162, %s27, 0
          %s164 = smul.addr %s163, 8
          %s165 = scalar_lea.vmem %s1, %s164
        $region16: #{tpu_custom_call.1} parent=11 // pred_fallthru
          _
        // Predicated region
        $region17: #{tpu_custom_call.1} parent=11 // pred_check
          %p166 = pneg %p114
        $region18: #{tpu_custom_call.1} parent=11 // pred_check_branch
          %168 = sbr.rel (%p166) target = $region20
        $region19: #{tpu_custom_call.1} parent=11 // pred_region
          %p169 = scmp.lt.s32.totalorder %s27, 0
          %s170 = scalar_select %p169, %s27, 0
          %s171 = smul.addr %s170, 8
          %s172 = scalar_lea.vmem %s2, %s171
        $region20: #{tpu_custom_call.1} parent=11 // pred_fallthru
          _
      $region12: #{tpu_custom_call.1} parent=5 // pred_fallthru
        _
      %p173 = scmp.lt.s32.totalorder %s15, 2
      // Predicated region
      $region21: #{tpu_custom_call.1} parent=5 // pred_check
        %p174 = pneg %p173
      $region22: #{tpu_custom_call.1} parent=5 // pred_check_branch
        %176 = sbr.rel (%p174) target = $region24
      $region23: #{tpu_custom_call.1} parent=5 // pred_region
        // Predicated region
        $region25: #{tpu_custom_call.1} parent=23 // pred_check
          %p177 = pneg %p56
        $region26: #{tpu_custom_call.1} parent=23 // pred_check_branch
          %179 = sbr.rel (%p177) target = $region28
        $region27: #{tpu_custom_call.1} parent=23 // pred_region
          %s180 = sand.u32 %s46, 1
          %s181 = scalar_lea.sflag [#allocation3], %s180
          %s182 = sand.u32 %s46, 1
          %s183 = smul.addr %s182, 8
          %s184 = scalar_lea.vmem [#allocation2], %s183
          %s186 = ssub.s32 128, 128
          %187 = vsyncadd %s181, %s186
          %s188 = sadd.s32 %s23, %s22
          %s189 = smul.addr %s188, 128
          %s190 = scalar_lea.hbm %s0, %s189
          %s192 = sshll.u32 %s184, 4
          %s193 = int_to_ptr.vmem [resolvable:$true] %s192
          %195 = dma.hbm_to_vmem [thread:$0]  %s190, 128, %s193, %s181
        $region28: #{tpu_custom_call.1} parent=23 // pred_fallthru
          _
      $region24: #{tpu_custom_call.1} parent=5 // pred_fallthru
        _
      %p196 = scmp.le.s32.totalorder 1, %s15
      %p197 = scmp.lt.s32.totalorder %s15, 3
      %p198 = pnand %p196, %p197
      %p199 = pneg %p198
      // Predicated region
      $region29: #{tpu_custom_call.1} parent=5 // pred_check
        _
      $region30: #{tpu_custom_call.1} parent=5 // pred_check_branch
        %201 = sbr.rel (%p198) target = $region32
      $region31: #{tpu_custom_call.1} parent=5 // pred_region
        %s202 = ssub.s32 %s15, 1
        %s203 = sand.u32 %s49, 1
        %s204 = scalar_lea.sflag [#allocation3], %s203
        %s205 = sand.u32 %s49, 1
        %s206 = smul.addr %s205, 8
        %s207 = scalar_lea.vmem [#allocation2], %s206
        // Predicated region
        $region33: #{tpu_custom_call.1} parent=31 // pred_check
          %p208 = pneg %p62
        $region34: #{tpu_custom_call.1} parent=31 // pred_check_branch
          %210 = sbr.rel (%p208) target = $region36
        $region35: #{tpu_custom_call.1} parent=31 // pred_region
          %211 = dma.done %s204, 128
        $region36: #{tpu_custom_call.1} parent=31 // pred_fallthru
          _
        %s212 = sand.u32 %s49, 1
        %s213 = scalar_lea.sflag [#allocation3], %s212
        %s214 = sand.u32 %s49, 1
        %s215 = smul.addr %s214, 8
        %s216 = scalar_lea.vmem [#allocation2], %s215
        %p217 = pneg %p62
        %p218 = pneg %p59
        %p219 = scmp.lt.s32.totalorder %s27, 0
        %s220 = scalar_select %p219, %s27, 0
        %s221 = smul.addr %s220, 8
        %s222 = scalar_lea.vmem %s1, %s221
        %p223 = pneg %p88
        %p224 = pneg %p85
        %p225 = scmp.lt.s32.totalorder %s27, 0
        %s226 = scalar_select %p225, %s27, 0
        %s227 = smul.addr %s226, 8
        %s228 = scalar_lea.vmem %s2, %s227
        %p229 = pneg %p114
        %p230 = pneg %p111
        %p231 = pneg %p144
        %p232 = pneg %p141
        %s233 = sand.u32 %s131, 1
        %s234 = scalar_lea.sflag [#allocation4], %s233
        %s235 = sand.u32 %s131, 1
        %s236 = smul.addr %s235, 8
        %s237 = scalar_lea.vmem [#allocation5], %s236
        %p238 = scmp.lt.s32.totalorder %s27, 0
        %s239 = scalar_select %p238, %s27, 0
        %s240 = smul.addr %s239, 8
        %s241 = scalar_lea.vmem %s1, %s240
        %p242 = scmp.lt.s32.totalorder %s27, 0
        %s243 = scalar_select %p242, %s27, 0
        %s244 = smul.addr %s243, 8
        %s245 = scalar_lea.vmem %s2, %s244
        %v246 = vld [vmem:[%s207] sm:$0xff]
        %v247 = vld [vmem:[%s241] sm:$0xff]
        %249 = vrot.lane.b32.xlu0 %v247, 120
        %v250 = vpop.permute.xlu0 %249
        %253 = vrot.lane.b32.xlu0 0.0, 2
        %v254 = vpop.permute.xlu0 %253
        %255 = vrot.lane.b32.xlu0 %v246, 2
        %v256 = vpop.permute.xlu0 %255
        %vm257 = vcmask 15360
        %v258 = vsel %vm257, %v254, %v256
        %vm260 = vcmask 64512
        %v261 = vsel %vm260, %v250, 0
        %263 = vmatprep.subr.mxu0 0.0
        %264 = vmatpush1.msra.mxu0 %v258
        %265 = vmatprep.subr.mxu0 0.0
        %266 = vmatpush1.msra.mxu0 0.0
        %267 = vmatprep.subr.mxu0 0.0
        %268 = vmatpush1.msra.mxu0 0.0
        %269 = vmatprep.subr.mxu0 0.0
        %270 = vmatpush1.msra.mxu0 0.0
        %271 = vmatprep.subr.mxu0 0.0
        %272 = vmatpush1.msra.mxu0 0.0
        %273 = vmatprep.subr.mxu0 0.0
        %274 = vmatpush1.msra.mxu0 0.0
        %275 = vmatprep.subr.mxu0 0.0
        %276 = vmatpush1.msra.mxu0 0.0
        %277 = vmatprep.subr.mxu0 0.0
        %278 = vmatpush1.msra.mxu0 0.0
        %279 = vmatprep.subr.mxu0 0.0
        %280 = vmatpush1.msra.mxu0 0.0
        %281 = vmatprep.subr.mxu0 0.0
        %282 = vmatpush1.msra.mxu0 0.0
        %283 = vmatprep.subr.mxu0 0.0
        %284 = vmatpush1.msra.mxu0 0.0
        %285 = vmatprep.subr.mxu0 0.0
        %286 = vmatpush1.msra.mxu0 0.0
        %287 = vmatprep.subr.mxu0 0.0
        %288 = vmatpush1.msra.mxu0 0.0
        %289 = vmatprep.subr.mxu0 0.0
        %290 = vmatpush1.msra.mxu0 0.0
        %291 = vmatprep.subr.mxu0 0.0
        %292 = vmatpush1.msra.mxu0 0.0
        %293 = vmatprep.subr.mxu0 0.0
        %294 = vmatpush1.msra.mxu0 0.0
        %295 = vmatprep.subr.mxu0 0.0
        %296 = vmatpush1.msra.mxu0 0.0
        %297 = vmatprep.subr.mxu0 0.0
        %298 = vmatpush1.msra.mxu0 0.0
        %299 = vmatprep.subr.mxu0 0.0
        %300 = vmatpush1.msra.mxu0 0.0
        %301 = vmatprep.subr.mxu0 0.0
        %302 = vmatpush1.msra.mxu0 0.0
        %303 = vmatprep.subr.mxu0 0.0
        %304 = vmatpush1.msra.mxu0 0.0
        %305 = vmatprep.subr.mxu0 0.0
        %306 = vmatpush1.msra.mxu0 0.0
        %307 = vmatprep.subr.mxu0 0.0
        %308 = vmatpush1.msra.mxu0 0.0
        %309 = vmatprep.subr.mxu0 0.0
        %310 = vmatpush1.msra.mxu0 0.0
        %311 = vmatprep.subr.mxu0 0.0
        %312 = vmatpush1.msra.mxu0 0.0
        %313 = vmatprep.subr.mxu0 0.0
        %314 = vmatpush1.msra.mxu0 0.0
        %315 = vmatprep.subr.mxu0 0.0
        %316 = vmatpush1.msra.mxu0 0.0
        %317 = vmatprep.subr.mxu0 0.0
        %318 = vmatpush1.msra.mxu0 0.0
        %319 = vmatprep.subr.mxu0 0.0
        %320 = vmatpush1.msra.mxu0 0.0
        %321 = vmatprep.subr.mxu0 0.0
        %322 = vmatpush1.msra.mxu0 0.0
        %323 = vmatprep.subr.mxu0 0.0
        %324 = vmatpush1.msra.mxu0 0.0
        %325 = vmatprep.subr.mxu0 0.0
        %326 = vmatpush1.msra.mxu0 0.0
        %327 = vmatprep.mubr.f32.mxu0 0.0
        %328 = vmatmul.mubr.f32.gmra.mrb[0].mxu0 %v261
        %v329 = vpop.f32.mrb[0].mxu0
        %v330 = vadd.f32 0.0, %v329
        %v331 = vpop.f32.mrb[0].mxu0
        %332 = vdwg.mxu0
        %333 = vrot.lane.b32.xlu0 0.0, 4
        %v334 = vpop.permute.xlu0 %333
        %335 = vrot.lane.b32.xlu0 %v246, 4
        %v336 = vpop.permute.xlu0 %335
        %vm337 = vcmask 31744
        %v338 = vsel %vm337, %v334, %v336
        %v340 = vsel %vm260, %v247, 0
        %342 = vmatprep.subr.mxu0 0.0
        %343 = vmatpush1.msra.mxu0 %v338
        %344 = vmatprep.subr.mxu0 0.0
        %345 = vmatpush1.msra.mxu0 0.0
        %346 = vmatprep.subr.mxu0 0.0
        %347 = vmatpush1.msra.mxu0 0.0
        %348 = vmatprep.subr.mxu0 0.0
        %349 = vmatpush1.msra.mxu0 0.0
        %350 = vmatprep.subr.mxu0 0.0
        %351 = vmatpush1.msra.mxu0 0.0
        %352 = vmatprep.subr.mxu0 0.0
        %353 = vmatpush1.msra.mxu0 0.0
        %354 = vmatprep.subr.mxu0 0.0
        %355 = vmatpush1.msra.mxu0 0.0
        %356 = vmatprep.subr.mxu0 0.0
        %357 = vmatpush1.msra.mxu0 0.0
        %358 = vmatprep.subr.mxu0 0.0
        %359 = vmatpush1.msra.mxu0 0.0
        %360 = vmatprep.subr.mxu0 0.0
        %361 = vmatpush1.msra.mxu0 0.0
        %362 = vmatprep.subr.mxu0 0.0
        %363 = vmatpush1.msra.mxu0 0.0
        %364 = vmatprep.subr.mxu0 0.0
        %365 = vmatpush1.msra.mxu0 0.0
        %366 = vmatprep.subr.mxu0 0.0
        %367 = vmatpush1.msra.mxu0 0.0
        %368 = vmatprep.subr.mxu0 0.0
        %369 = vmatpush1.msra.mxu0 0.0
        %370 = vmatprep.subr.mxu0 0.0
        %371 = vmatpush1.msra.mxu0 0.0
        %372 = vmatprep.subr.mxu0 0.0
        %373 = vmatpush1.msra.mxu0 0.0
        %374 = vmatprep.subr.mxu0 0.0
        %375 = vmatpush1.msra.mxu0 0.0
        %376 = vmatprep.subr.mxu0 0.0
        %377 = vmatpush1.msra.mxu0 0.0
        %378 = vmatprep.subr.mxu0 0.0
        %379 = vmatpush1.msra.mxu0 0.0
        %380 = vmatprep.subr.mxu0 0.0
        %381 = vmatpush1.msra.mxu0 0.0
        %382 = vmatprep.subr.mxu0 0.0
        %383 = vmatpush1.msra.mxu0 0.0
        %384 = vmatprep.subr.mxu0 0.0
        %385 = vmatpush1.msra.mxu0 0.0
        %386 = vmatprep.subr.mxu0 0.0
        %387 = vmatpush1.msra.mxu0 0.0
        %388 = vmatprep.subr.mxu0 0.0
        %389 = vmatpush1.msra.mxu0 0.0
        %390 = vmatprep.subr.mxu0 0.0
        %391 = vmatpush1.msra.mxu0 0.0
        %392 = vmatprep.subr.mxu0 0.0
        %393 = vmatpush1.msra.mxu0 0.0
        %394 = vmatprep.subr.mxu0 0.0
        %395 = vmatpush1.msra.mxu0 0.0
        %396 = vmatprep.subr.mxu0 0.0
        %397 = vmatpush1.msra.mxu0 0.0
        %398 = vmatprep.subr.mxu0 0.0
        %399 = vmatpush1.msra.mxu0 0.0
        %400 = vmatprep.subr.mxu0 0.0
        %401 = vmatpush1.msra.mxu0 0.0
        %402 = vmatprep.subr.mxu0 0.0
        %403 = vmatpush1.msra.mxu0 0.0
        %404 = vmatprep.subr.mxu0 0.0
        %405 = vmatpush1.msra.mxu0 0.0
        %406 = vmatprep.mubr.f32.mxu0 0.0
        %407 = vmatmul.mubr.f32.gmra.mrb[0].mxu0 %v340
        %v408 = vpop.f32.mrb[0].mxu0
        %v409 = vadd.f32 %v330, %v408
        %v410 = vpop.f32.mrb[0].mxu0
        %411 = vdwg.mxu0
        %412 = vrot.lane.b32.xlu0 %v247, 112
        %v413 = vpop.permute.xlu0 %412
        %v414 = vsel %vm260, %v413, 0
        %416 = vmatprep.subr.mxu0 0.0
        %417 = vmatpush1.msra.mxu0 %v246
        %418 = vmatprep.subr.mxu0 0.0
        %419 = vmatpush1.msra.mxu0 0.0
        %420 = vmatprep.subr.mxu0 0.0
        %421 = vmatpush1.msra.mxu0 0.0
        %422 = vmatprep.subr.mxu0 0.0
        %423 = vmatpush1.msra.mxu0 0.0
        %424 = vmatprep.subr.mxu0 0.0
        %425 = vmatpush1.msra.mxu0 0.0
        %426 = vmatprep.subr.mxu0 0.0
        %427 = vmatpush1.msra.mxu0 0.0
        %428 = vmatprep.subr.mxu0 0.0
        %429 = vmatpush1.msra.mxu0 0.0
        %430 = vmatprep.subr.mxu0 0.0
        %431 = vmatpush1.msra.mxu0 0.0
        %432 = vmatprep.subr.mxu0 0.0
        %433 = vmatpush1.msra.mxu0 0.0
        %434 = vmatprep.subr.mxu0 0.0
        %435 = vmatpush1.msra.mxu0 0.0
        %436 = vmatprep.subr.mxu0 0.0
        %437 = vmatpush1.msra.mxu0 0.0
        %438 = vmatprep.subr.mxu0 0.0
        %439 = vmatpush1.msra.mxu0 0.0
        %440 = vmatprep.subr.mxu0 0.0
        %441 = vmatpush1.msra.mxu0 0.0
        %442 = vmatprep.subr.mxu0 0.0
        %443 = vmatpush1.msra.mxu0 0.0
        %444 = vmatprep.subr.mxu0 0.0
        %445 = vmatpush1.msra.mxu0 0.0
        %446 = vmatprep.subr.mxu0 0.0
        %447 = vmatpush1.msra.mxu0 0.0
        %448 = vmatprep.subr.mxu0 0.0
        %449 = vmatpush1.msra.mxu0 0.0
        %450 = vmatprep.subr.mxu0 0.0
        %451 = vmatpush1.msra.mxu0 0.0
        %452 = vmatprep.subr.mxu0 0.0
        %453 = vmatpush1.msra.mxu0 0.0
        %454 = vmatprep.subr.mxu0 0.0
        %455 = vmatpush1.msra.mxu0 0.0
        %456 = vmatprep.subr.mxu0 0.0
        %457 = vmatpush1.msra.mxu0 0.0
        %458 = vmatprep.subr.mxu0 0.0
        %459 = vmatpush1.msra.mxu0 0.0
        %460 = vmatprep.subr.mxu0 0.0
        %461 = vmatpush1.msra.mxu0 0.0
        %462 = vmatprep.subr.mxu0 0.0
        %463 = vmatpush1.msra.mxu0 0.0
        %464 = vmatprep.subr.mxu0 0.0
        %465 = vmatpush1.msra.mxu0 0.0
        %466 = vmatprep.subr.mxu0 0.0
        %467 = vmatpush1.msra.mxu0 0.0
        %468 = vmatprep.subr.mxu0 0.0
        %469 = vmatpush1.msra.mxu0 0.0
        %470 = vmatprep.subr.mxu0 0.0
        %471 = vmatpush1.msra.mxu0 0.0
        %472 = vmatprep.subr.mxu0 0.0
        %473 = vmatpush1.msra.mxu0 0.0
        %474 = vmatprep.subr.mxu0 0.0
        %475 = vmatpush1.msra.mxu0 0.0
        %476 = vmatprep.subr.mxu0 0.0
        %477 = vmatpush1.msra.mxu0 0.0
        %478 = vmatprep.subr.mxu0 0.0
        %479 = vmatpush1.msra.mxu0 0.0
        %480 = vmatprep.mubr.f32.mxu0 0.0
        %481 = vmatmul.mubr.f32.gmra.mrb[0].mxu0 %v414
        %v482 = vpop.f32.mrb[0].mxu0
        %v483 = vadd.f32 0.0, %v482
        %v484 = vpop.f32.mrb[0].mxu0
        %485 = vdwg.mxu0
        %v486 = vadd.f32 %v409, %v483
        %v487 = vld [vmem:[%s245] sm:$0xff]
        %489 = vset.pattern.permute.xlu0 0
        %490 = vperm.xlu0 %489, %v487
        %v491 = vpop.permute.xlu0 %490
        %v493 = vadd.f32 %v486, %v491
        %vm494 = vcmask 130048
        %495 = vst.msk [vmem:[%s237] sm:$0xff] %vm494, %v493
        %s496 = sand.u32 %s131, 1
        %s497 = scalar_lea.sflag [#allocation4], %s496
        %s498 = sand.u32 %s131, 1
        %s499 = smul.addr %s498, 8
        %s500 = scalar_lea.vmem [#allocation5], %s499
        // Predicated region
        $region37: #{tpu_custom_call.1} parent=31 // pred_check
          %p501 = pneg %p141
        $region38: #{tpu_custom_call.1} parent=31 // pred_check_branch
          %503 = sbr.rel (%p501) target = $region40
        $region39: #{tpu_custom_call.1} parent=31 // pred_region
          %s505 = ssub.s32 128, 128
          %506 = vsyncadd %s497, %s505
          %s507 = sadd.s32 %s26, %s27
          %s508 = sadd.s32 %s507, %s25
          %s509 = smul.addr %s508, 128
          %s510 = scalar_lea.hbm %s3, %s509
          %s512 = sshll.u32 %s500, 4
          %s513 = int_to_ptr.vmem [resolvable:$true] %s512
          %515 = dma.vmem_to_hbm [thread:$0]  %s513, 128, %s510, %s497
        $region40: #{tpu_custom_call.1} parent=31 // pred_fallthru
          _
      $region32: #{tpu_custom_call.1} parent=5 // pred_fallthru
        _
      %p516 = scmp.le.s32.totalorder 2, %s15
      // Predicated region
      $region41: #{tpu_custom_call.1} parent=5 // pred_check
        %p517 = pneg %p516
      $region42: #{tpu_custom_call.1} parent=5 // pred_check_branch
        %519 = sbr.rel (%p517) target = $region44
      $region43: #{tpu_custom_call.1} parent=5 // pred_region
        %s520 = ssub.s32 %s15, 2
        // Predicated region
        $region45: #{tpu_custom_call.1} parent=43 // pred_check
          %p521 = pneg %p147
        $region46: #{tpu_custom_call.1} parent=43 // pred_check_branch
          %523 = sbr.rel (%p521) target = $region48
        $region47: #{tpu_custom_call.1} parent=43 // pred_region
          %s524 = sand.u32 %s132, 1
          %s525 = scalar_lea.sflag [#allocation4], %s524
          %s526 = sand.u32 %s132, 1
          %s527 = smul.addr %s526, 8
          %s528 = scalar_lea.vmem [#allocation5], %s527
          %529 = dma.done %s525, 128
        $region48: #{tpu_custom_call.1} parent=43 // pred_fallthru
          _
      $region44: #{tpu_custom_call.1} parent=5 // pred_fallthru
        _
    $region6: #{tpu_custom_call.1} parent=1 // loop_footer
      %s19 = sadd.s32 1, %s15
    $region7: #{tpu_custom_call.1} parent=1 // loop_footer_branch
      %14 = sbr.rel target = $region3
    $region8: #{tpu_custom_call.1} parent=1 // loop_exit
      _
    %530 = vsyncpa [#allocation3], 1
    %s531 = scalar_lea.sflag [#allocation3], 1
    %532 = vsyncpa %s531, 1
    %533 = vsyncpa [#allocation4], 1
    %s534 = scalar_lea.sflag [#allocation4], 1
    %535 = vsyncpa %s534, 1

</llo_original>
